<compile_context>
chip_gen: v6e
topology: v6e:2x2x1
jax: 0.10.0
libtpu: 0.0.40
codegen_flags: <defaults>
</compile_context>

<pallas_src>
import functools

import jax
import jax.numpy as jnp
from jax.experimental import pallas as pl
from jax.experimental.pallas import tpu as pltpu


def _round_up(x: int, m: int) -> int:
    return ((x + m - 1) // m) * m


def _make_discriminator_kernel(num_linear_layers: int, relu_leak: float):
    """Kernel over one (features, TILE_B) batch tile; full MLP unrolled in-kernel."""

    def kernel(x_ref, *refs):
        # refs = (w0, b0, w1, b1, ..., w_{L-1}, b_{L-1}, out_ref)
        out_ref = refs[-1]
        z = x_ref[...]                                  # (in_dim, TILE_B), compute dtype
        for i in range(num_linear_layers):
            w = refs[2 * i][...]                        # (out, in), compute dtype
            b = refs[2 * i + 1][...]                    # (out, 1), f32 (post-accumulate add)
            if z.dtype != w.dtype:                      # static decision (trace time)
                z = z.astype(w.dtype)
            acc = jnp.dot(w, z, preferred_element_type=jnp.float32) + b  # (out, TILE_B) f32
            # LeakyReLU (0 < leak < 1): one VPU max instead of compare+select.
            z = jnp.maximum(acc, relu_leak * acc)
        # Sigmoid in f32: exp and approx reciprocal both issue on the EUP slot.
        out_ref[...] = pl.reciprocal(1.0 + jnp.exp(-z), approx=True).astype(out_ref.dtype)

    return kernel


def init_discriminator_params(key, latent_top_dim, latent_const_dim, n_layers, layer_size):
    """PyTorch-style uniform(+/- 1/sqrt(fan_in)) init. W is (out, in), b is (out, 1)."""
    dims = [latent_top_dim + latent_const_dim] + [layer_size] * (n_layers + 1) + [1]
    params = []
    for i in range(len(dims) - 1):
        fan_in, fan_out = dims[i], dims[i + 1]
        key, kw, kb = jax.random.split(key, 3)
        bound = 1.0 / jnp.sqrt(jnp.float32(fan_in))
        w = jax.random.uniform(kw, (fan_out, fan_in), jnp.float32, -bound, bound)
        b = jax.random.uniform(kb, (fan_out, 1), jnp.float32, -bound, bound)
        params.append((w, b))
    return params


@functools.partial(jax.jit, static_argnames=("relu_leak", "tile_b", "compute_dtype"))
def discriminator_forward(z, params, relu_leak, *, tile_b=512, compute_dtype=jnp.float32):
    """z: (batch, latent_top_dim + latent_const_dim) f32 -> (batch, 1) f32."""
    batch, in_dim = z.shape
    num_linear_layers = len(params)

    # Batch lives on the lane axis; tile must be a multiple of 128. Cap the tile at the
    # (128-rounded) batch so small batches don't over-pad; larger batches pipeline.
    tile_b = max(128, min(int(tile_b), _round_up(batch, 128)))
    padded_batch = _round_up(batch, tile_b)

    # Layout plumbing in the wrapper: transpose to (features, batch), zero-pad batch.
    x_t = jnp.zeros((in_dim, padded_batch), compute_dtype)
    x_t = x_t.at[:, :batch].set(z.T.astype(compute_dtype))

    flat_args = [x_t]
    in_specs = [pl.BlockSpec((in_dim, tile_b), lambda i: (0, i))]
    for w, b in params:
        w_c = w.astype(compute_dtype)       # MXU inputs in compute dtype (bf16 on v6e/v7x)
        flat_args += [w_c, b]               # bias stays f32 (added to f32 accumulator)
        # Constant index_map: weights/biases fetched once, resident across the grid.
        in_specs.append(pl.BlockSpec(w_c.shape, lambda i: (0, 0)))
        in_specs.append(pl.BlockSpec(b.shape, lambda i: (0, 0)))

    kernel = _make_discriminator_kernel(num_linear_layers, float(relu_leak))

    out_t = pl.pallas_call(
        kernel,
        out_shape=jax.ShapeDtypeStruct((1, padded_batch), jnp.float32),
        grid=(padded_batch // tile_b,),
        in_specs=in_specs,
        out_specs=pl.BlockSpec((1, tile_b), lambda i: (0, i)),
        compiler_params=pltpu.CompilerParams(
            dimension_semantics=("parallel",),   # v7x: shard batch tiles over both TCs
        ),
    )(*flat_args)

    return out_t.T[:batch]   # (batch, 1)


def discriminator_reference(z, params, relu_leak):
    """Pure-JAX reference (weights (out, in), biases (out, 1)) for correctness checking."""
    for w, b in params:
        z = z @ w.T + b.reshape(1, -1)
        z = jnp.where(z >= 0.0, z, relu_leak * z)
    return jax.nn.sigmoid(z)


if __name__ == "__main__":
    # Small, forward-consistent configuration.
    latent_top_dim = 4
    latent_const_dim = 4
    n_layers = 2
    layer_size = 32
    relu_leak = 0.2
    batch = 8

    key = jax.random.PRNGKey(0)
    key, k_in = jax.random.split(key)
    z_in = jax.random.normal(k_in, (batch, latent_top_dim + latent_const_dim), jnp.float32)

    params = init_discriminator_params(
        key, latent_top_dim, latent_const_dim, n_layers, layer_size
    )

    ref = discriminator_reference(z_in, params, relu_leak)

    # f32 path (default). Tolerance accounts for the EUP approx reciprocal in the sigmoid.
    out = discriminator_forward(z_in, params, relu_leak)
    out = jax.block_until_ready(out)
    assert out.shape == (batch, 1), out.shape
    assert jnp.allclose(out, ref, atol=1e-3, rtol=1e-3), (out, ref)

    # bf16 MXU-input path (v6e/v7x HBM-traffic lever); f32 accumulate/bias/sigmoid inside.
    out_bf16 = discriminator_forward(z_in, params, relu_leak, compute_dtype=jnp.bfloat16)
    out_bf16 = jax.block_until_ready(out_bf16)
    assert out_bf16.shape == (batch, 1), out_bf16.shape
    assert jnp.allclose(out_bf16, ref, atol=5e-2, rtol=5e-2), (out_bf16, ref)

    print("KERNEL_OK")
</pallas_src>

<mosaic_0001>
module attributes {stable_mosaic.version = 11 : i64} {
  func.func @kernel(%arg0: i32, %arg1: memref<8x128xf32, #tpu.memory_space<vmem>>, %arg2: memref<32x8xf32, #tpu.memory_space<vmem>>, %arg3: memref<32x1xf32, #tpu.memory_space<vmem>>, %arg4: memref<32x32xf32, #tpu.memory_space<vmem>>, %arg5: memref<32x1xf32, #tpu.memory_space<vmem>>, %arg6: memref<32x32xf32, #tpu.memory_space<vmem>>, %arg7: memref<32x1xf32, #tpu.memory_space<vmem>>, %arg8: memref<1x32xf32, #tpu.memory_space<vmem>>, %arg9: memref<1x1xf32, #tpu.memory_space<vmem>>, %arg10: memref<1x128xf32, #tpu.memory_space<vmem>>) attributes {dimension_semantics = [#tpu.dimension_semantics<parallel>], iteration_bounds = array<i64: 1>, scalar_prefetch = 0 : i64, scratch_operands = 0 : i64, tpu.core_type = #tpu.core_type<tc>, window_params = [{transform_indices = @transform_0, window_bounds = array<i64: 8, 128>}, {pipeline_mode = #tpu.pipeline_mode<synchronous>, transform_indices = @transform_1, window_bounds = array<i64: 32, 8>}, {pipeline_mode = #tpu.pipeline_mode<synchronous>, transform_indices = @transform_2, window_bounds = array<i64: 32, 1>}, {pipeline_mode = #tpu.pipeline_mode<synchronous>, transform_indices = @transform_3, window_bounds = array<i64: 32, 32>}, {pipeline_mode = #tpu.pipeline_mode<synchronous>, transform_indices = @transform_4, window_bounds = array<i64: 32, 1>}, {pipeline_mode = #tpu.pipeline_mode<synchronous>, transform_indices = @transform_5, window_bounds = array<i64: 32, 32>}, {pipeline_mode = #tpu.pipeline_mode<synchronous>, transform_indices = @transform_6, window_bounds = array<i64: 32, 1>}, {pipeline_mode = #tpu.pipeline_mode<synchronous>, transform_indices = @transform_7, window_bounds = array<i64: 1, 32>}, {pipeline_mode = #tpu.pipeline_mode<synchronous>, transform_indices = @transform_8, window_bounds = array<i64: 1, 1>}, {transform_indices = @transform_9, window_bounds = array<i64: 1, 128>}]} {
    %c0 = arith.constant 0 : index
    %c0_0 = arith.constant 0 : index
    %0 = vector.load %arg1[%c0, %c0_0] : memref<8x128xf32, #tpu.memory_space<vmem>>, vector<8x128xf32>
    %c0_1 = arith.constant 0 : index
    %c0_2 = arith.constant 0 : index
    %1 = vector.load %arg2[%c0_1, %c0_2] : memref<32x8xf32, #tpu.memory_space<vmem>>, vector<32x8xf32>
    %c0_3 = arith.constant 0 : index
    %c0_4 = arith.constant 0 : index
    %2 = vector.load %arg3[%c0_3, %c0_4] : memref<32x1xf32, #tpu.memory_space<vmem>>, vector<32x1xf32>
    %cst = arith.constant dense<0.000000e+00> : vector<32x128xf32>
    %3 = tpu.matmul %1, %0, %cst {dimension_numbers = #tpu.dot_dimension_numbers<[1], [0], [0], [1], [0, 0, 1, 1], [], []>} : vector<32x8xf32>, vector<8x128xf32>, vector<32x128xf32> -> vector<32x128xf32>
    %4 = vector.broadcast %2 : vector<32x1xf32> to vector<32x128xf32>
    %5 = arith.addf %3, %4 : vector<32x128xf32>
    %cst_5 = arith.constant 2.000000e-01 : f32
    %6 = vector.broadcast %cst_5 : f32 to vector<32x128xf32>
    %7 = arith.mulf %6, %5 : vector<32x128xf32>
    %8 = arith.maximumf %5, %7 : vector<32x128xf32>
    %c0_6 = arith.constant 0 : index
    %c0_7 = arith.constant 0 : index
    %9 = vector.load %arg4[%c0_6, %c0_7] : memref<32x32xf32, #tpu.memory_space<vmem>>, vector<32x32xf32>
    %c0_8 = arith.constant 0 : index
    %c0_9 = arith.constant 0 : index
    %10 = vector.load %arg5[%c0_8, %c0_9] : memref<32x1xf32, #tpu.memory_space<vmem>>, vector<32x1xf32>
    %cst_10 = arith.constant dense<0.000000e+00> : vector<32x128xf32>
    %11 = tpu.matmul %9, %8, %cst_10 {dimension_numbers = #tpu.dot_dimension_numbers<[1], [0], [0], [1], [0, 0, 1, 1], [], []>} : vector<32x32xf32>, vector<32x128xf32>, vector<32x128xf32> -> vector<32x128xf32>
    %12 = vector.broadcast %10 : vector<32x1xf32> to vector<32x128xf32>
    %13 = arith.addf %11, %12 : vector<32x128xf32>
    %cst_11 = arith.constant 2.000000e-01 : f32
    %14 = vector.broadcast %cst_11 : f32 to vector<32x128xf32>
    %15 = arith.mulf %14, %13 : vector<32x128xf32>
    %16 = arith.maximumf %13, %15 : vector<32x128xf32>
    %c0_12 = arith.constant 0 : index
    %c0_13 = arith.constant 0 : index
    %17 = vector.load %arg6[%c0_12, %c0_13] : memref<32x32xf32, #tpu.memory_space<vmem>>, vector<32x32xf32>
    %c0_14 = arith.constant 0 : index
    %c0_15 = arith.constant 0 : index
    %18 = vector.load %arg7[%c0_14, %c0_15] : memref<32x1xf32, #tpu.memory_space<vmem>>, vector<32x1xf32>
    %cst_16 = arith.constant dense<0.000000e+00> : vector<32x128xf32>
    %19 = tpu.matmul %17, %16, %cst_16 {dimension_numbers = #tpu.dot_dimension_numbers<[1], [0], [0], [1], [0, 0, 1, 1], [], []>} : vector<32x32xf32>, vector<32x128xf32>, vector<32x128xf32> -> vector<32x128xf32>
    %20 = vector.broadcast %18 : vector<32x1xf32> to vector<32x128xf32>
    %21 = arith.addf %19, %20 : vector<32x128xf32>
    %cst_17 = arith.constant 2.000000e-01 : f32
    %22 = vector.broadcast %cst_17 : f32 to vector<32x128xf32>
    %23 = arith.mulf %22, %21 : vector<32x128xf32>
    %24 = arith.maximumf %21, %23 : vector<32x128xf32>
    %c0_18 = arith.constant 0 : index
    %c0_19 = arith.constant 0 : index
    %25 = vector.load %arg8[%c0_18, %c0_19] : memref<1x32xf32, #tpu.memory_space<vmem>>, vector<1x32xf32>
    %c0_20 = arith.constant 0 : index
    %c0_21 = arith.constant 0 : index
    %26 = vector.load %arg9[%c0_20, %c0_21] : memref<1x1xf32, #tpu.memory_space<vmem>>, vector<1x1xf32>
    %cst_22 = arith.constant dense<0.000000e+00> : vector<1x128xf32>
    %27 = tpu.matmul %25, %24, %cst_22 {dimension_numbers = #tpu.dot_dimension_numbers<[1], [0], [0], [1], [0, 0, 1, 1], [], []>} : vector<1x32xf32>, vector<32x128xf32>, vector<1x128xf32> -> vector<1x128xf32>
    %28 = vector.broadcast %26 : vector<1x1xf32> to vector<1x128xf32>
    %29 = arith.addf %27, %28 : vector<1x128xf32>
    %cst_23 = arith.constant 2.000000e-01 : f32
    %30 = vector.broadcast %cst_23 : f32 to vector<1x128xf32>
    %31 = arith.mulf %30, %29 : vector<1x128xf32>
    %32 = arith.maximumf %29, %31 : vector<1x128xf32>
    %cst_24 = arith.constant 0.000000e+00 : f32
    %33 = vector.broadcast %cst_24 : f32 to vector<1x128xf32>
    %34 = arith.subf %33, %32 : vector<1x128xf32>
    %35 = math.exp %34 : vector<1x128xf32>
    %cst_25 = arith.constant 1.000000e+00 : f32
    %36 = vector.broadcast %cst_25 : f32 to vector<1x128xf32>
    %37 = arith.addf %36, %35 : vector<1x128xf32>
    %38 = tpu.reciprocal %37 {approx = true} : vector<1x128xf32> -> vector<1x128xf32>
    %c0_26 = arith.constant 0 : index
    %c0_27 = arith.constant 0 : index
    %39 = vector.load %arg10[%c0_26, %c0_27] : memref<1x128xf32, #tpu.memory_space<vmem>>, vector<1x128xf32>
    tpu.vector_store %arg10[%c0_26, %c0_27], %38 {strides = array<i32>} : memref<1x128xf32, #tpu.memory_space<vmem>>, vector<1x128xf32>,
    return
  }
  func.func @transform_0(%arg0: i32) -> (i32, i32) {
    %c0_i32 = arith.constant 0 : i32
    %c0_i32_0 = arith.constant 0 : i32
    return %c0_i32, %arg0 : i32, i32
  }
  func.func @transform_1(%arg0: i32) -> (i32, i32) {
    %c0_i32 = arith.constant 0 : i32
    %c0_i32_0 = arith.constant 0 : i32
    %c0_i32_1 = arith.constant 0 : i32
    return %c0_i32, %c0_i32_0 : i32, i32
  }
  func.func @transform_2(%arg0: i32) -> (i32, i32) {
    %c0_i32 = arith.constant 0 : i32
    %c0_i32_0 = arith.constant 0 : i32
    %c0_i32_1 = arith.constant 0 : i32
    return %c0_i32, %c0_i32_0 : i32, i32
  }
  func.func @transform_3(%arg0: i32) -> (i32, i32) {
    %c0_i32 = arith.constant 0 : i32
    %c0_i32_0 = arith.constant 0 : i32
    %c0_i32_1 = arith.constant 0 : i32
    return %c0_i32, %c0_i32_0 : i32, i32
  }
  func.func @transform_4(%arg0: i32) -> (i32, i32) {
    %c0_i32 = arith.constant 0 : i32
    %c0_i32_0 = arith.constant 0 : i32
    %c0_i32_1 = arith.constant 0 : i32
    return %c0_i32, %c0_i32_0 : i32, i32
  }
  func.func @transform_5(%arg0: i32) -> (i32, i32) {
    %c0_i32 = arith.constant 0 : i32
    %c0_i32_0 = arith.constant 0 : i32
    %c0_i32_1 = arith.constant 0 : i32
    return %c0_i32, %c0_i32_0 : i32, i32
  }
  func.func @transform_6(%arg0: i32) -> (i32, i32) {
    %c0_i32 = arith.constant 0 : i32
    %c0_i32_0 = arith.constant 0 : i32
    %c0_i32_1 = arith.constant 0 : i32
    return %c0_i32, %c0_i32_0 : i32, i32
  }
  func.func @transform_7(%arg0: i32) -> (i32, i32) {
    %c0_i32 = arith.constant 0 : i32
    %c0_i32_0 = arith.constant 0 : i32
    %c0_i32_1 = arith.constant 0 : i32
    return %c0_i32, %c0_i32_0 : i32, i32
  }
  func.func @transform_8(%arg0: i32) -> (i32, i32) {
    %c0_i32 = arith.constant 0 : i32
    %c0_i32_0 = arith.constant 0 : i32
    %c0_i32_1 = arith.constant 0 : i32
    return %c0_i32, %c0_i32_0 : i32, i32
  }
  func.func @transform_9(%arg0: i32) -> (i32, i32) {
    %c0_i32 = arith.constant 0 : i32
    %c0_i32_0 = arith.constant 0 : i32
    return %c0_i32, %arg0 : i32, i32
  }
}

</mosaic_0001>

<llo_original>
// kernel: discriminator_forward.1
$region0: #{discriminator_forward.1}
  #allocation0 [shape = 'u32[]', space=smem, size = 0x4, offset = 0x4, fixed_abs, tag = 'smem constant byte address 0x4 - core index']
  #allocation1 [shape = 'u32[144,128]{1,0:T(1,128)}', space=vmem, size = 0x12000, scoped, tag = 'internal scratch']
  #allocation2 [shape = 'f32[1,1]{1,0:T(1,128)S(1)}', space=vmem, size = 0x200, scoped, tag = 'scoped memory for discriminator_forward.1']
  %s0 = inlined_call_operand.vmem [shape: f32[8,128], index: 0, kind: input, shape index: {}]
  %s1 = inlined_call_operand.vmem [shape: f32[32,8], index: 1, kind: input, shape index: {}]
  %s2 = inlined_call_operand.vmem [shape: f32[32,1], index: 2, kind: input, shape index: {}]
  %s3 = inlined_call_operand.vmem [shape: f32[32,32], index: 3, kind: input, shape index: {}]
  %s4 = inlined_call_operand.vmem [shape: f32[32,1], index: 4, kind: input, shape index: {}]
  %s5 = inlined_call_operand.vmem [shape: f32[32,32], index: 5, kind: input, shape index: {}]
  %s6 = inlined_call_operand.vmem [shape: f32[32,1], index: 6, kind: input, shape index: {}]
  %s7 = inlined_call_operand.vmem [shape: f32[1,32], index: 7, kind: input, shape index: {}]
  %s8 = inlined_call_operand.<no memory space> [shape: f32[1,1], index: 8, kind: input, shape index: {}]
  %s9 = inlined_call_operand.vmem [shape: f32[1,128], index: 9, kind: output, shape index: {}]
  %s10 = sld [smem:[#allocation0]]
  $region46: #{discriminator_forward.1} parent=0
    _
  %s12 = ssub.s32 1, %s10
  %s13 = scalar_select 0, %s12, %s10
  %v14 = vstv %s8
  %15 = vst [vmem:[#allocation2] sm:$0x1] %v14
  // Predicated region
  $region2: #{discriminator_forward.1} parent=0 // pred_check
    _
  $region3: #{discriminator_forward.1} parent=0 // pred_check_branch
    %17 = sbr.rel (0) target = $region5
  $region4: #{discriminator_forward.1} parent=0 // pred_region
    _
  $region5: #{discriminator_forward.1} parent=0 // pred_fallthru
    _
  // Predicated region
  $region6: #{discriminator_forward.1} parent=0 // pred_check
    _
  $region7: #{discriminator_forward.1} parent=0 // pred_check_branch
    %19 = sbr.rel (0) target = $region9
  $region8: #{discriminator_forward.1} parent=0 // pred_region
    _
  $region9: #{discriminator_forward.1} parent=0 // pred_fallthru
    _
  // Predicated region
  $region10: #{discriminator_forward.1} parent=0 // pred_check
    _
  $region11: #{discriminator_forward.1} parent=0 // pred_check_branch
    %21 = sbr.rel (0) target = $region13
  $region12: #{discriminator_forward.1} parent=0 // pred_region
    _
  $region13: #{discriminator_forward.1} parent=0 // pred_fallthru
    _
  // Predicated region
  $region14: #{discriminator_forward.1} parent=0 // pred_check
    _
  $region15: #{discriminator_forward.1} parent=0 // pred_check_branch
    %23 = sbr.rel (0) target = $region17
  $region16: #{discriminator_forward.1} parent=0 // pred_region
    _
  $region17: #{discriminator_forward.1} parent=0 // pred_fallthru
    _
  // Predicated region
  $region18: #{discriminator_forward.1} parent=0 // pred_check
    _
  $region19: #{discriminator_forward.1} parent=0 // pred_check_branch
    %25 = sbr.rel (0) target = $region21
  $region20: #{discriminator_forward.1} parent=0 // pred_region
    _
  $region21: #{discriminator_forward.1} parent=0 // pred_fallthru
    _
  // Predicated region
  $region22: #{discriminator_forward.1} parent=0 // pred_check
    _
  $region23: #{discriminator_forward.1} parent=0 // pred_check_branch
    %27 = sbr.rel (0) target = $region25
  $region24: #{discriminator_forward.1} parent=0 // pred_region
    _
  $region25: #{discriminator_forward.1} parent=0 // pred_fallthru
    _
  // Predicated region
  $region26: #{discriminator_forward.1} parent=0 // pred_check
    _
  $region27: #{discriminator_forward.1} parent=0 // pred_check_branch
    %29 = sbr.rel (0) target = $region29
  $region28: #{discriminator_forward.1} parent=0 // pred_region
    _
  $region29: #{discriminator_forward.1} parent=0 // pred_fallthru
    _
  // Predicated region
  $region30: #{discriminator_forward.1} parent=0 // pred_check
    _
  $region31: #{discriminator_forward.1} parent=0 // pred_check_branch
    %31 = sbr.rel (0) target = $region33
  $region32: #{discriminator_forward.1} parent=0 // pred_region
    _
  $region33: #{discriminator_forward.1} parent=0 // pred_fallthru
    _
  // Predicated region
  $region34: #{discriminator_forward.1} parent=0 // pred_check
    _
  $region35: #{discriminator_forward.1} parent=0 // pred_check_branch
    %33 = sbr.rel (0) target = $region37
  $region36: #{discriminator_forward.1} parent=0 // pred_region
    _
  $region37: #{discriminator_forward.1} parent=0 // pred_fallthru
    _
  %v34 = vld [vmem:[%s0] sm:$0xff]
  %v35 = vld [vmem:[%s1] sm:$0xff]
  %v36 = vld [vmem:[%s1 + $0x8] sm:$0xff]
  %v37 = vld [vmem:[%s1 + $0x10] sm:$0xff]
  %v38 = vld [vmem:[%s1 + $0x18] sm:$0xff]
  %v39 = vld [vmem:[%s2] sm:$0xff]
  %v40 = vld [vmem:[%s2 + $0x8] sm:$0xff]
  %v41 = vld [vmem:[%s2 + $0x10] sm:$0xff]
  %v42 = vld [vmem:[%s2 + $0x18] sm:$0xff]
  %44 = vset.pattern.permute.xlu0 0
  %45 = vperm.xlu0 %44, %v39
  %v46 = vpop.permute.xlu0 %45
  %49 = vset.pattern.permute.xlu0 0
  %50 = vperm.xlu0 %49, %v40
  %v51 = vpop.permute.xlu0 %50
  %54 = vset.pattern.permute.xlu0 0
  %55 = vperm.xlu0 %54, %v41
  %v56 = vpop.permute.xlu0 %55
  %59 = vset.pattern.permute.xlu0 0
  %60 = vperm.xlu0 %59, %v42
  %v61 = vpop.permute.xlu0 %60
  %vm63 = vcmask 64512
  %v65 = vsel %vm63, %v35, 0
  %v68 = vsel %vm63, %v36, 0
  %v71 = vsel %vm63, %v37, 0
  %v74 = vsel %vm63, %v38, 0
  %76 = vmatprep.subr.mxu0 0.0
  %77 = vmatpush1.msra.mxu0 0.0
  %78 = vmatprep.subr.mxu0 0.0
  %79 = vmatpush1.msra.mxu0 0.0
  %80 = vmatprep.subr.mxu0 0.0
  %81 = vmatpush1.msra.mxu0 0.0
  %82 = vmatprep.subr.mxu0 0.0
  %83 = vmatpush1.msra.mxu0 0.0
  %84 = vmatprep.subr.mxu0 0.0
  %85 = vmatpush1.msra.mxu0 0.0
  %86 = vmatprep.subr.mxu0 0.0
  %87 = vmatpush1.msra.mxu0 0.0
  %88 = vmatprep.subr.mxu0 0.0
  %89 = vmatpush1.msra.mxu0 0.0
  %90 = vmatprep.subr.mxu0 0.0
  %91 = vmatpush1.msra.mxu0 0.0
  %92 = vmatprep.subr.mxu0 0.0
  %93 = vmatpush1.msra.mxu0 0.0
  %94 = vmatprep.subr.mxu0 0.0
  %95 = vmatpush1.msra.mxu0 0.0
  %96 = vmatprep.subr.mxu0 0.0
  %97 = vmatpush1.msra.mxu0 0.0
  %98 = vmatprep.subr.mxu0 0.0
  %99 = vmatpush1.msra.mxu0 0.0
  %100 = vmatprep.subr.mxu0 0.0
  %101 = vmatpush1.msra.mxu0 0.0
  %102 = vmatprep.subr.mxu0 0.0
  %103 = vmatpush1.msra.mxu0 0.0
  %104 = vmatprep.subr.mxu0 0.0
  %105 = vmatpush1.msra.mxu0 0.0
  %106 = vmatprep.subr.mxu0 0.0
  %107 = vmatpush1.msra.mxu0 %v34
  %108 = vmatprep.subr.mxu0 0.0
  %109 = vmatpush2.msra.mxu0 0.0
  %110 = vmatprep.subr.mxu0 0.0
  %111 = vmatpush2.msra.mxu0 0.0
  %112 = vmatprep.subr.mxu0 0.0
  %113 = vmatpush2.msra.mxu0 0.0
  %114 = vmatprep.subr.mxu0 0.0
  %115 = vmatpush2.msra.mxu0 0.0
  %116 = vmatprep.subr.mxu0 0.0
  %117 = vmatpush2.msra.mxu0 0.0
  %118 = vmatprep.subr.mxu0 0.0
  %119 = vmatpush2.msra.mxu0 0.0
  %120 = vmatprep.subr.mxu0 0.0
  %121 = vmatpush2.msra.mxu0 0.0
  %122 = vmatprep.subr.mxu0 0.0
  %123 = vmatpush2.msra.mxu0 0.0
  %124 = vmatprep.subr.mxu0 0.0
  %125 = vmatpush2.msra.mxu0 0.0
  %126 = vmatprep.subr.mxu0 0.0
  %127 = vmatpush2.msra.mxu0 0.0
  %128 = vmatprep.subr.mxu0 0.0
  %129 = vmatpush2.msra.mxu0 0.0
  %130 = vmatprep.subr.mxu0 0.0
  %131 = vmatpush2.msra.mxu0 0.0
  %132 = vmatprep.subr.mxu0 0.0
  %133 = vmatpush2.msra.mxu0 0.0
  %134 = vmatprep.subr.mxu0 0.0
  %135 = vmatpush2.msra.mxu0 0.0
  %136 = vmatprep.subr.mxu0 0.0
  %137 = vmatpush2.msra.mxu0 0.0
  %138 = vmatprep.subr.mxu0 0.0
  %139 = vmatpush2.msra.mxu0 0.0
  %140 = vmatprep.mubr.f32.mxu0 0.0
  %141 = vmatmul.mubr.f32.gmra.mxu0 %v65
  %v142 = vpop.f32.mrf.mxu0
  %v143 = vadd.f32 %v46, %v142
  %v144 = vpop.f32.mrf.mxu0
  %145 = vmatprep.mubr.f32.mxu0 0.0
  %146 = vmatmul.mubr.f32.gmra.mxu0 %v68
  %v147 = vpop.f32.mrf.mxu0
  %v148 = vadd.f32 %v51, %v147
  %v149 = vpop.f32.mrf.mxu0
  %150 = vmatprep.mubr.f32.mxu0 0.0
  %151 = vmatmul.mubr.f32.gmra.mxu0 %v71
  %v152 = vpop.f32.mrf.mxu0
  %v153 = vadd.f32 %v56, %v152
  %v154 = vpop.f32.mrf.mxu0
  %155 = vmatprep.mubr.f32.mxu0 0.0
  %156 = vmatmul.mubr.f32.gmra.mxu0 %v74
  %v157 = vpop.f32.mrf.mxu0
  %v158 = vadd.f32 %v61, %v157
  %v159 = vpop.f32.mrf.mxu0
  %160 = vdwg.mxu0
  %v161 = vmul.f32 %v143, 0.2
  %v162 = vmul.f32 %v148, 0.2
  %v163 = vmul.f32 %v153, 0.2
  %v164 = vmul.f32 %v158, 0.2
  %v165 = vmax.f32 %v143, %v161
  %v166 = vmax.f32 %v148, %v162
  %v167 = vmax.f32 %v153, %v163
  %v168 = vmax.f32 %v158, %v164
  %v169 = vld [vmem:[%s3] sm:$0xff]
  %v170 = vld [vmem:[%s3 + $0x8] sm:$0xff]
  %v171 = vld [vmem:[%s3 + $0x10] sm:$0xff]
  %v172 = vld [vmem:[%s3 + $0x18] sm:$0xff]
  %v173 = vld [vmem:[%s4] sm:$0xff]
  %v174 = vld [vmem:[%s4 + $0x8] sm:$0xff]
  %v175 = vld [vmem:[%s4 + $0x10] sm:$0xff]
  %v176 = vld [vmem:[%s4 + $0x18] sm:$0xff]
  %178 = vset.pattern.permute.xlu0 0
  %179 = vperm.xlu0 %178, %v173
  %v180 = vpop.permute.xlu0 %179
  %183 = vset.pattern.permute.xlu0 0
  %184 = vperm.xlu0 %183, %v174
  %v185 = vpop.permute.xlu0 %184
  %188 = vset.pattern.permute.xlu0 0
  %189 = vperm.xlu0 %188, %v175
  %v190 = vpop.permute.xlu0 %189
  %193 = vset.pattern.permute.xlu0 0
  %194 = vperm.xlu0 %193, %v176
  %v195 = vpop.permute.xlu0 %194
  %vm197 = vcmask 261120
  %v199 = vsel %vm197, %v169, 0
  %v202 = vsel %vm197, %v170, 0
  %v205 = vsel %vm197, %v171, 0
  %v208 = vsel %vm197, %v172, 0
  %210 = vmatprep.subr.mxu0 0.0
  %211 = vmatpush1.msra.mxu0 0.0
  %212 = vmatprep.subr.mxu0 0.0
  %213 = vmatpush1.msra.mxu0 0.0
  %214 = vmatprep.subr.mxu0 0.0
  %215 = vmatpush1.msra.mxu0 0.0
  %216 = vmatprep.subr.mxu0 0.0
  %217 = vmatpush1.msra.mxu0 0.0
  %218 = vmatprep.subr.mxu0 0.0
  %219 = vmatpush1.msra.mxu0 0.0
  %220 = vmatprep.subr.mxu0 0.0
  %221 = vmatpush1.msra.mxu0 0.0
  %222 = vmatprep.subr.mxu0 0.0
  %223 = vmatpush1.msra.mxu0 0.0
  %224 = vmatprep.subr.mxu0 0.0
  %225 = vmatpush1.msra.mxu0 0.0
  %226 = vmatprep.subr.mxu0 0.0
  %227 = vmatpush1.msra.mxu0 0.0
  %228 = vmatprep.subr.mxu0 0.0
  %229 = vmatpush1.msra.mxu0 0.0
  %230 = vmatprep.subr.mxu0 0.0
  %231 = vmatpush1.msra.mxu0 0.0
  %232 = vmatprep.subr.mxu0 0.0
  %233 = vmatpush1.msra.mxu0 0.0
  %234 = vmatprep.subr.mxu0 0.0
  %235 = vmatpush1.msra.mxu0 %v168
  %236 = vmatprep.subr.mxu0 0.0
  %237 = vmatpush1.msra.mxu0 %v167
  %238 = vmatprep.subr.mxu0 0.0
  %239 = vmatpush1.msra.mxu0 %v166
  %240 = vmatprep.subr.mxu0 0.0
  %241 = vmatpush1.msra.mxu0 %v165
  %242 = vmatprep.subr.mxu0 0.0
  %243 = vmatpush2.msra.mxu0 0.0
  %244 = vmatprep.subr.mxu0 0.0
  %245 = vmatpush2.msra.mxu0 0.0
  %246 = vmatprep.subr.mxu0 0.0
  %247 = vmatpush2.msra.mxu0 0.0
  %248 = vmatprep.subr.mxu0 0.0
  %249 = vmatpush2.msra.mxu0 0.0
  %250 = vmatprep.subr.mxu0 0.0
  %251 = vmatpush2.msra.mxu0 0.0
  %252 = vmatprep.subr.mxu0 0.0
  %253 = vmatpush2.msra.mxu0 0.0
  %254 = vmatprep.subr.mxu0 0.0
  %255 = vmatpush2.msra.mxu0 0.0
  %256 = vmatprep.subr.mxu0 0.0
  %257 = vmatpush2.msra.mxu0 0.0
  %258 = vmatprep.subr.mxu0 0.0
  %259 = vmatpush2.msra.mxu0 0.0
  %260 = vmatprep.subr.mxu0 0.0
  %261 = vmatpush2.msra.mxu0 0.0
  %262 = vmatprep.subr.mxu0 0.0
  %263 = vmatpush2.msra.mxu0 0.0
  %264 = vmatprep.subr.mxu0 0.0
  %265 = vmatpush2.msra.mxu0 0.0
  %266 = vmatprep.subr.mxu0 0.0
  %267 = vmatpush2.msra.mxu0 0.0
  %268 = vmatprep.subr.mxu0 0.0
  %269 = vmatpush2.msra.mxu0 0.0
  %270 = vmatprep.subr.mxu0 0.0
  %271 = vmatpush2.msra.mxu0 0.0
  %272 = vmatprep.subr.mxu0 0.0
  %273 = vmatpush2.msra.mxu0 0.0
  %274 = vmatprep.mubr.f32.mxu0 0.0
  %275 = vmatmul.mubr.f32.gmra.mxu0 %v199
  %v276 = vpop.f32.mrf.mxu0
  %v277 = vadd.f32 %v180, %v276
  %v278 = vpop.f32.mrf.mxu0
  %279 = vmatprep.mubr.f32.mxu0 0.0
  %280 = vmatmul.mubr.f32.gmra.mxu0 %v202
  %v281 = vpop.f32.mrf.mxu0
  %v282 = vadd.f32 %v185, %v281
  %v283 = vpop.f32.mrf.mxu0
  %284 = vmatprep.mubr.f32.mxu0 0.0
  %285 = vmatmul.mubr.f32.gmra.mxu0 %v205
  %v286 = vpop.f32.mrf.mxu0
  %v287 = vadd.f32 %v190, %v286
  %v288 = vpop.f32.mrf.mxu0
  %289 = vmatprep.mubr.f32.mxu0 0.0
  %290 = vmatmul.mubr.f32.gmra.mxu0 %v208
  %v291 = vpop.f32.mrf.mxu0
  %v292 = vadd.f32 %v195, %v291
  %v293 = vpop.f32.mrf.mxu0
  %294 = vdwg.mxu0
  %v295 = vmul.f32 %v277, 0.2
  %v296 = vmul.f32 %v282, 0.2
  %v297 = vmul.f32 %v287, 0.2
  %v298 = vmul.f32 %v292, 0.2
  %v299 = vmax.f32 %v277, %v295
  %v300 = vmax.f32 %v282, %v296
  %v301 = vmax.f32 %v287, %v297
  %v302 = vmax.f32 %v292, %v298
  %v303 = vld [vmem:[%s5] sm:$0xff]
  %v304 = vld [vmem:[%s5 + $0x8] sm:$0xff]
  %v305 = vld [vmem:[%s5 + $0x10] sm:$0xff]
  %v306 = vld [vmem:[%s5 + $0x18] sm:$0xff]
  %v307 = vld [vmem:[%s6] sm:$0xff]
  %v308 = vld [vmem:[%s6 + $0x8] sm:$0xff]
  %v309 = vld [vmem:[%s6 + $0x10] sm:$0xff]
  %v310 = vld [vmem:[%s6 + $0x18] sm:$0xff]
  %312 = vset.pattern.permute.xlu0 0
  %313 = vperm.xlu0 %312, %v307
  %v314 = vpop.permute.xlu0 %313
  %317 = vset.pattern.permute.xlu0 0
  %318 = vperm.xlu0 %317, %v308
  %v319 = vpop.permute.xlu0 %318
  %322 = vset.pattern.permute.xlu0 0
  %323 = vperm.xlu0 %322, %v309
  %v324 = vpop.permute.xlu0 %323
  %327 = vset.pattern.permute.xlu0 0
  %328 = vperm.xlu0 %327, %v310
  %v329 = vpop.permute.xlu0 %328
  %v332 = vsel %vm197, %v303, 0
  %v335 = vsel %vm197, %v304, 0
  %v338 = vsel %vm197, %v305, 0
  %v341 = vsel %vm197, %v306, 0
  %343 = vmatprep.subr.mxu0 0.0
  %344 = vmatpush1.msra.mxu0 0.0
  %345 = vmatprep.subr.mxu0 0.0
  %346 = vmatpush1.msra.mxu0 0.0
  %347 = vmatprep.subr.mxu0 0.0
  %348 = vmatpush1.msra.mxu0 0.0
  %349 = vmatprep.subr.mxu0 0.0
  %350 = vmatpush1.msra.mxu0 0.0
  %351 = vmatprep.subr.mxu0 0.0
  %352 = vmatpush1.msra.mxu0 0.0
  %353 = vmatprep.subr.mxu0 0.0
  %354 = vmatpush1.msra.mxu0 0.0
  %355 = vmatprep.subr.mxu0 0.0
  %356 = vmatpush1.msra.mxu0 0.0
  %357 = vmatprep.subr.mxu0 0.0
  %358 = vmatpush1.msra.mxu0 0.0
  %359 = vmatprep.subr.mxu0 0.0
  %360 = vmatpush1.msra.mxu0 0.0
  %361 = vmatprep.subr.mxu0 0.0
  %362 = vmatpush1.msra.mxu0 0.0
  %363 = vmatprep.subr.mxu0 0.0
  %364 = vmatpush1.msra.mxu0 0.0
  %365 = vmatprep.subr.mxu0 0.0
  %366 = vmatpush1.msra.mxu0 0.0
  %367 = vmatprep.subr.mxu0 0.0
  %368 = vmatpush1.msra.mxu0 %v302
  %369 = vmatprep.subr.mxu0 0.0
  %370 = vmatpush1.msra.mxu0 %v301
  %371 = vmatprep.subr.mxu0 0.0
  %372 = vmatpush1.msra.mxu0 %v300
  %373 = vmatprep.subr.mxu0 0.0
  %374 = vmatpush1.msra.mxu0 %v299
  %375 = vmatprep.subr.mxu0 0.0
  %376 = vmatpush2.msra.mxu0 0.0
  %377 = vmatprep.subr.mxu0 0.0
  %378 = vmatpush2.msra.mxu0 0.0
  %379 = vmatprep.subr.mxu0 0.0
  %380 = vmatpush2.msra.mxu0 0.0
  %381 = vmatprep.subr.mxu0 0.0
  %382 = vmatpush2.msra.mxu0 0.0
  %383 = vmatprep.subr.mxu0 0.0
  %384 = vmatpush2.msra.mxu0 0.0
  %385 = vmatprep.subr.mxu0 0.0
  %386 = vmatpush2.msra.mxu0 0.0
  %387 = vmatprep.subr.mxu0 0.0
  %388 = vmatpush2.msra.mxu0 0.0
  %389 = vmatprep.subr.mxu0 0.0
  %390 = vmatpush2.msra.mxu0 0.0
  %391 = vmatprep.subr.mxu0 0.0
  %392 = vmatpush2.msra.mxu0 0.0
  %393 = vmatprep.subr.mxu0 0.0
  %394 = vmatpush2.msra.mxu0 0.0
  %395 = vmatprep.subr.mxu0 0.0
  %396 = vmatpush2.msra.mxu0 0.0
  %397 = vmatprep.subr.mxu0 0.0
  %398 = vmatpush2.msra.mxu0 0.0
  %399 = vmatprep.subr.mxu0 0.0
  %400 = vmatpush2.msra.mxu0 0.0
  %401 = vmatprep.subr.mxu0 0.0
  %402 = vmatpush2.msra.mxu0 0.0
  %403 = vmatprep.subr.mxu0 0.0
  %404 = vmatpush2.msra.mxu0 0.0
  %405 = vmatprep.subr.mxu0 0.0
  %406 = vmatpush2.msra.mxu0 0.0
  %407 = vmatprep.mubr.f32.mxu0 0.0
  %408 = vmatmul.mubr.f32.gmra.mxu0 %v332
  %v409 = vpop.f32.mrf.mxu0
  %v410 = vadd.f32 %v314, %v409
  %v411 = vpop.f32.mrf.mxu0
  %412 = vmatprep.mubr.f32.mxu0 0.0
  %413 = vmatmul.mubr.f32.gmra.mxu0 %v335
  %v414 = vpop.f32.mrf.mxu0
  %v415 = vadd.f32 %v319, %v414
  %v416 = vpop.f32.mrf.mxu0
  %417 = vmatprep.mubr.f32.mxu0 0.0
  %418 = vmatmul.mubr.f32.gmra.mxu0 %v338
  %v419 = vpop.f32.mrf.mxu0
  %v420 = vadd.f32 %v324, %v419
  %v421 = vpop.f32.mrf.mxu0
  %422 = vmatprep.mubr.f32.mxu0 0.0
  %423 = vmatmul.mubr.f32.gmra.mxu0 %v341
  %v424 = vpop.f32.mrf.mxu0
  %v425 = vadd.f32 %v329, %v424
  %v426 = vpop.f32.mrf.mxu0
  %427 = vdwg.mxu0
  %v428 = vmul.f32 %v410, 0.2
  %v429 = vmul.f32 %v415, 0.2
  %v430 = vmul.f32 %v420, 0.2
  %v431 = vmul.f32 %v425, 0.2
  %v432 = vmax.f32 %v410, %v428
  %v433 = vmax.f32 %v415, %v429
  %v434 = vmax.f32 %v420, %v430
  %v435 = vmax.f32 %v425, %v431
  %v436 = vld [vmem:[%s7] sm:$0x1]
  %v437 = vld [vmem:[#allocation2] sm:$0x1]
  %439 = vset.pattern.permute.xlu0 0
  %440 = vperm.xlu0 %439, %v437
  %v441 = vpop.permute.xlu0 %440
  %v443 = vlaneseq
  %v444 = vshrl.u32 %v443, 7
  %v445 = vsub.s32 0, %v444
  %v446 = vrot.slane %v441, %v445
  %v448 = vsel %vm197, %v436, 0
  %450 = vmatprep.subr.mxu0 0.0
  %451 = vmatpush1.msra.mxu0 0.0
  %452 = vmatprep.subr.mxu0 0.0
  %453 = vmatpush1.msra.mxu0 0.0
  %454 = vmatprep.subr.mxu0 0.0
  %455 = vmatpush1.msra.mxu0 0.0
  %456 = vmatprep.subr.mxu0 0.0
  %457 = vmatpush1.msra.mxu0 0.0
  %458 = vmatprep.subr.mxu0 0.0
  %459 = vmatpush1.msra.mxu0 0.0
  %460 = vmatprep.subr.mxu0 0.0
  %461 = vmatpush1.msra.mxu0 0.0
  %462 = vmatprep.subr.mxu0 0.0
  %463 = vmatpush1.msra.mxu0 0.0
  %464 = vmatprep.subr.mxu0 0.0
  %465 = vmatpush1.msra.mxu0 0.0
  %466 = vmatprep.subr.mxu0 0.0
  %467 = vmatpush1.msra.mxu0 0.0
  %468 = vmatprep.subr.mxu0 0.0
  %469 = vmatpush1.msra.mxu0 0.0
  %470 = vmatprep.subr.mxu0 0.0
  %471 = vmatpush1.msra.mxu0 0.0
  %472 = vmatprep.subr.mxu0 0.0
  %473 = vmatpush1.msra.mxu0 0.0
  %474 = vmatprep.subr.mxu0 0.0
  %475 = vmatpush1.msra.mxu0 %v435
  %476 = vmatprep.subr.mxu0 0.0
  %477 = vmatpush1.msra.mxu0 %v434
  %478 = vmatprep.subr.mxu0 0.0
  %479 = vmatpush1.msra.mxu0 %v433
  %480 = vmatprep.subr.mxu0 0.0
  %481 = vmatpush1.msra.mxu0 %v432
  %482 = vmatprep.subr.mxu0 0.0
  %483 = vmatpush2.msra.mxu0 0.0
  %484 = vmatprep.subr.mxu0 0.0
  %485 = vmatpush2.msra.mxu0 0.0
  %486 = vmatprep.subr.mxu0 0.0
  %487 = vmatpush2.msra.mxu0 0.0
  %488 = vmatprep.subr.mxu0 0.0
  %489 = vmatpush2.msra.mxu0 0.0
  %490 = vmatprep.subr.mxu0 0.0
  %491 = vmatpush2.msra.mxu0 0.0
  %492 = vmatprep.subr.mxu0 0.0
  %493 = vmatpush2.msra.mxu0 0.0
  %494 = vmatprep.subr.mxu0 0.0
  %495 = vmatpush2.msra.mxu0 0.0
  %496 = vmatprep.subr.mxu0 0.0
  %497 = vmatpush2.msra.mxu0 0.0
  %498 = vmatprep.subr.mxu0 0.0
  %499 = vmatpush2.msra.mxu0 0.0
  %500 = vmatprep.subr.mxu0 0.0
  %501 = vmatpush2.msra.mxu0 0.0
  %502 = vmatprep.subr.mxu0 0.0
  %503 = vmatpush2.msra.mxu0 0.0
  %504 = vmatprep.subr.mxu0 0.0
  %505 = vmatpush2.msra.mxu0 0.0
  %506 = vmatprep.subr.mxu0 0.0
  %507 = vmatpush2.msra.mxu0 0.0
  %508 = vmatprep.subr.mxu0 0.0
  %509 = vmatpush2.msra.mxu0 0.0
  %510 = vmatprep.subr.mxu0 0.0
  %511 = vmatpush2.msra.mxu0 0.0
  %512 = vmatprep.subr.mxu0 0.0
  %513 = vmatpush2.msra.mxu0 0.0
  %514 = vmatprep.mubr.f32.mxu0 0.0
  %515 = vmatmul.mubr.f32.gmra.mxu0 %v448
  %v516 = vpop.f32.mrf.mxu0
  %v517 = vadd.f32 %v446, %v516
  %v518 = vpop.f32.mrf.mxu0
  %519 = vdwg.mxu0
  %v520 = vmul.f32 %v517, 0.2
  %v521 = vmax.f32 %v517, %v520
  %v522 = vsub.f32 0.0, %v521
  %v523 = vmul.f32 %v522, 1.442695
  %v524 = vpow.pop %v523
  %v525 = vadd.f32 %v524, 1.0
  %v526 = vrcp.pop %v525
  %527 = vst [vmem:[%s9] sm:$0x1] %v526
  // Predicated region
  $region38: #{discriminator_forward.1} parent=0 // pred_check
    _
  $region39: #{discriminator_forward.1} parent=0 // pred_check_branch
    %529 = sbr.rel (0) target = $region41
  $region40: #{discriminator_forward.1} parent=0 // pred_region
    _
  $region41: #{discriminator_forward.1} parent=0 // pred_fallthru
    _
  // Predicated region
  $region42: #{discriminator_forward.1} parent=0 // pred_check
    _
  $region43: #{discriminator_forward.1} parent=0 // pred_check_branch
    %531 = sbr.rel (0) target = $region45
  $region44: #{discriminator_forward.1} parent=0 // pred_region
    _
  $region45: #{discriminator_forward.1} parent=0 // pred_fallthru
    _

</llo_original>
